<compile_context>
chip_gen: v5e
topology: v5e:2x2
jax: 0.10.0
libtpu: 0.0.40
codegen_flags: <defaults>
</compile_context>

<pallas_src>
import functools

import jax
import jax.numpy as jnp
from jax.experimental import pallas as pl
from jax.experimental.pallas import tpu as pltpu


def _rain_robust_loss_kernel(x_tile_ref, x_full_ref, out_ref, *,
                             batch_size, inv_temperature, matmul_dtype):
    i = pl.program_id(0)
    n_rows = x_full_ref.shape[0]          # N = batch_size * n_views (static)
    tm = x_tile_ref.shape[0]              # row-tile size (static)
    inv_t = jnp.float32(inv_temperature)
    eps_sq = jnp.float32(1e-24)           # (F.normalize eps = 1e-12) ** 2

    # ---- RHS: all rows, L2-normalized (rsqrt * mul); f32, optionally cast for the MXU ----
    xf = x_full_ref[...].astype(jnp.float32)
    f_all = (xf * jax.lax.rsqrt(jnp.maximum(
        jnp.sum(xf * xf, axis=1, keepdims=True), eps_sq))).astype(matmul_dtype)

    # ---- LHS: this step's row tile, normalized, with 1/temperature folded into the operand ----
    xt = x_tile_ref[...].astype(jnp.float32)
    f_tile = (xt * (jax.lax.rsqrt(jnp.maximum(
        jnp.sum(xt * xt, axis=1, keepdims=True), eps_sq)) * inv_t)).astype(matmul_dtype)

    # sim[j, r] = <f_j, f_(row0+r)> / temperature  -> (N, tm), f32 accumulation on the MXU.
    # Transposed orientation keeps the per-row reductions along sublanes and the output lane-dense.
    sim = jax.lax.dot_general(f_all, f_tile, (((1,), (1,)), ((), ())),
                              preferred_element_type=jnp.float32)

    # ---- closed-form positive column and self (diagonal) index ----
    row0 = i * tm
    g = row0 + jax.lax.broadcasted_iota(jnp.int32, (1, tm), 1)        # global row index per column
    j = jax.lax.broadcasted_iota(jnp.int32, (n_rows, tm), 0)          # similarity-partner index
    tgt = jnp.where(g < batch_size, g + batch_size, g % batch_size)   # first off-diag same-label j

    # ---- logsumexp over j != row with the constant shift 1/T (diag of normalized sim == 1) ----
    e = jnp.exp(sim - inv_t)                     # all args <= ~0 -> safe without a max-reduce
    e = jnp.where(j == g, 0.0, e)                # remove self-similarity exactly
    denom = jnp.sum(e, axis=0, keepdims=True)                            # (1, tm)
    pos = jnp.sum(jnp.where(j == tgt, sim, 0.0), axis=0, keepdims=True)  # (1, tm) positive logit

    # Cross-entropy with target class 0, per row; lane-dense store.
    out_ref[...] = (inv_t + jnp.log(denom)) - pos


def _pick_row_tile(n_rows, cap):
    """Largest multiple of 128 that divides n_rows and is <= cap; else a single full tile."""
    best = 0
    t = 128
    while t <= min(cap, n_rows):
        if n_rows % t == 0:
            best = t
        t += 128
    return best if best > 0 else n_rows


def rain_robust_loss(features, batch_size, n_views, temperature=0.07, *,
                     row_tile=256, matmul_dtype=jnp.float32):
    """Pallas forward of RainRobustLoss.

    matmul_dtype=jnp.bfloat16 enables the fast MXU path on v6e/v7x (normalization and the
    exp / logsumexp path stay in f32). row_tile=256 keeps the sim tile within v7x's VMEM.
    """
    n_rows, feat_dim = features.shape
    assert n_rows == batch_size * n_views, "features rows must equal batch_size * n_views"
    assert n_views >= 2, "info-NCE loss needs at least 2 views per sample"

    tm = _pick_row_tile(n_rows, row_tile)
    num_tiles = n_rows // tm

    kernel = functools.partial(
        _rain_robust_loss_kernel,
        batch_size=batch_size,
        inv_temperature=1.0 / float(temperature),
        matmul_dtype=matmul_dtype,
    )

    # VMEM budget: resident features (+ f32 normalized + cast copy), the pipelined row tile,
    # and the (N, tm) sim / exp / mask temporaries. Clamp below v7x's 64 MiB physical VMEM.
    op_bytes = jnp.dtype(matmul_dtype).itemsize
    est = (n_rows * feat_dim * (2 * 4 + 4 + op_bytes)       # full input (2 bufs) + f32 norm + cast
           + 2 * tm * feat_dim * (4 + op_bytes)             # double-buffered row tile + lhs
           + 6 * tm * n_rows * 4                            # sim, exp, iota, masks, temporaries
           + 16 * tm)
    vmem_limit = int(min(max(32 * 2**20, 2 * est), 56 * 2**20))

    per_row = pl.pallas_call(
        kernel,
        out_shape=jax.ShapeDtypeStruct((1, n_rows), jnp.float32),
        grid=(num_tiles,),
        in_specs=[
            pl.BlockSpec((tm, feat_dim), lambda i: (i, 0)),       # row tile (pipelined)
            pl.BlockSpec((n_rows, feat_dim), lambda i: (0, 0)),   # full features (resident)
        ],
        out_specs=pl.BlockSpec((1, tm), lambda i: (0, i)),        # lane-dense per-row losses
        compiler_params=pltpu.CompilerParams(
            dimension_semantics=("parallel",),                    # shard row tiles across TCs
            vmem_limit_bytes=vmem_limit,
        ),
        cost_estimate=pl.CostEstimate(
            flops=2 * n_rows * n_rows * feat_dim + 8 * n_rows * n_rows,
            transcendentals=n_rows * n_rows + 3 * n_rows,
            bytes_accessed=2 * n_rows * feat_dim * features.dtype.itemsize + 4 * n_rows,
        ),
    )(features, features)

    return jnp.mean(per_row)   # final mean outside the kernel (tiny XLA reduce)


def _reference_loss(features, batch_size, n_views, temperature=0.07):
    # Pure-JAX reference mirroring the PyTorch code, for a sanity check only (eager, small N).
    N = batch_size * n_views
    labels = jnp.tile(jnp.arange(batch_size), n_views)
    lab = (labels[None, :] == labels[:, None]).astype(jnp.float32)
    f = features / jnp.maximum(jnp.linalg.norm(features, axis=1, keepdims=True), 1e-12)
    sim = f @ f.T
    mask = jnp.eye(N, dtype=bool)
    lab_nd = lab[~mask].reshape(N, N - 1)
    sim_nd = sim[~mask].reshape(N, N - 1)
    positives = sim_nd[lab_nd.astype(bool)].reshape(N, -1)
    negatives = sim_nd[~lab_nd.astype(bool)].reshape(N, -1)
    logits = jnp.concatenate([positives, negatives], axis=1) / temperature
    lse = jax.scipy.special.logsumexp(logits, axis=1)
    return jnp.mean(lse - logits[:, 0])


if __name__ == "__main__":
    # Small deterministic shapes consistent with the module: N = batch * views rows, D features.
    batch_size, n_views, feat_dim = 4, 2, 32
    key = jax.random.PRNGKey(0)
    features = jax.random.normal(key, (batch_size * n_views, feat_dim), dtype=jnp.float32)

    loss = jax.block_until_ready(rain_robust_loss(features, batch_size, n_views, temperature=0.07))
    ref = _reference_loss(features, batch_size, n_views, temperature=0.07)
    assert jnp.allclose(loss, ref, atol=1e-4, rtol=1e-4), (loss, ref)

    # Multi-tile path (grid > 1) with the "parallel" row-tile axis.
    b2, v2, d2 = 128, 2, 64
    f2 = jax.random.normal(jax.random.PRNGKey(1), (b2 * v2, d2), dtype=jnp.float32)
    loss2 = jax.block_until_ready(rain_robust_loss(f2, b2, v2, row_tile=128))
    ref2 = _reference_loss(f2, b2, v2)
    assert jnp.allclose(loss2, ref2, atol=1e-3, rtol=1e-3), (loss2, ref2)

    # bf16 matmul operands (v6e/v7x MXU fast path); lse math stays f32. Sanity: runs + finite.
    loss_bf16 = jax.block_until_ready(
        rain_robust_loss(features, batch_size, n_views, matmul_dtype=jnp.bfloat16))
    assert bool(jnp.isfinite(loss_bf16)), loss_bf16

    print("KERNEL_OK")
</pallas_src>

<mosaic_0001>
module attributes {stable_mosaic.version = 11 : i64} {
  func.func @_rain_robust_loss_kernel(%arg0: i32, %arg1: memref<8x32xf32, #tpu.memory_space<vmem>>, %arg2: memref<8x32xf32, #tpu.memory_space<vmem>>, %arg3: memref<1x8xf32, #tpu.memory_space<vmem>>) attributes {dimension_semantics = [#tpu.dimension_semantics<parallel>], iteration_bounds = array<i64: 1>, scalar_prefetch = 0 : i64, scratch_operands = 0 : i64, tpu.core_type = #tpu.core_type<tc>, window_params = [{transform_indices = @transform_0, window_bounds = array<i64: 8, 32>}, {pipeline_mode = #tpu.pipeline_mode<synchronous>, transform_indices = @transform_1, window_bounds = array<i64: 8, 32>}, {transform_indices = @transform_2, window_bounds = array<i64: 1, 8>}]} {
    %c0 = arith.constant 0 : index
    %c0_0 = arith.constant 0 : index
    %0 = vector.load %arg2[%c0, %c0_0] : memref<8x32xf32, #tpu.memory_space<vmem>>, vector<8x32xf32>
    %1 = arith.mulf %0, %0 : vector<8x32xf32>
    %cst = arith.constant dense<0.000000e+00> : vector<8xf32>
    %2 = vector.multi_reduction <add>, %1, %cst [1] : vector<8x32xf32> to vector<8xf32>
    %3 = vector.shape_cast %2 : vector<8xf32> to vector<8x1xf32>
    %cst_1 = arith.constant 1.000000e-24 : f32
    %4 = vector.broadcast %cst_1 : f32 to vector<8x1xf32>
    %5 = arith.maximumf %3, %4 : vector<8x1xf32>
    %6 = math.rsqrt %5 : vector<8x1xf32>
    %7 = vector.broadcast %6 : vector<8x1xf32> to vector<8x32xf32>
    %8 = arith.mulf %0, %7 : vector<8x32xf32>
    %c0_2 = arith.constant 0 : index
    %c0_3 = arith.constant 0 : index
    %9 = vector.load %arg1[%c0_2, %c0_3] : memref<8x32xf32, #tpu.memory_space<vmem>>, vector<8x32xf32>
    %10 = arith.mulf %9, %9 : vector<8x32xf32>
    %cst_4 = arith.constant dense<0.000000e+00> : vector<8xf32>
    %11 = vector.multi_reduction <add>, %10, %cst_4 [1] : vector<8x32xf32> to vector<8xf32>
    %12 = vector.shape_cast %11 : vector<8xf32> to vector<8x1xf32>
    %cst_5 = arith.constant 1.000000e-24 : f32
    %13 = vector.broadcast %cst_5 : f32 to vector<8x1xf32>
    %14 = arith.maximumf %12, %13 : vector<8x1xf32>
    %15 = math.rsqrt %14 : vector<8x1xf32>
    %cst_6 = arith.constant 14.2857141 : f32
    %16 = vector.broadcast %cst_6 : f32 to vector<8x1xf32>
    %17 = arith.mulf %15, %16 : vector<8x1xf32>
    %18 = vector.broadcast %17 : vector<8x1xf32> to vector<8x32xf32>
    %19 = arith.mulf %9, %18 : vector<8x32xf32>
    %cst_7 = arith.constant dense<0.000000e+00> : vector<8x8xf32>
    %20 = tpu.matmul %8, %19, %cst_7 {dimension_numbers = #tpu.dot_dimension_numbers<[1], [1], [0], [0], [0, 0, 1, 0], [], []>} : vector<8x32xf32>, vector<8x32xf32>, vector<8x8xf32> -> vector<8x8xf32>
    %c8_i32 = arith.constant 8 : i32
    %21 = arith.muli %arg0, %c8_i32 : i32
    %22 = tpu.iota {dimensions = array<i32: 1>} : vector<1x8xi32>
    %23 = vector.broadcast %21 : i32 to vector<1x8xi32>
    %24 = arith.addi %23, %22 : vector<1x8xi32>
    %25 = tpu.iota {dimensions = array<i32: 0>} : vector<8x8xi32>
    %c4_i32 = arith.constant 4 : i32
    %26 = vector.broadcast %c4_i32 : i32 to vector<1x8xi32>
    %27 = arith.cmpi slt, %24, %26 : vector<1x8xi32>
    %c4_i32_8 = arith.constant 4 : i32
    %28 = vector.broadcast %c4_i32_8 : i32 to vector<1x8xi32>
    %29 = arith.addi %24, %28 : vector<1x8xi32>
    %c4_i32_9 = arith.constant 4 : i32
    %c0_i32 = arith.constant 0 : i32
    %30 = arith.cmpi eq, %c4_i32_9, %c0_i32 : i32
    %c1_i32 = arith.constant 1 : i32
    %31 = arith.select %30, %c1_i32, %c4_i32_9 : i32
    %32 = vector.broadcast %31 : i32 to vector<1x8xi32>
    %33 = arith.remsi %24, %32 : vector<1x8xi32>
    %c0_i32_10 = arith.constant 0 : i32
    %34 = vector.broadcast %c0_i32_10 : i32 to vector<1x8xi32>
    %35 = arith.cmpi ne, %33, %34 : vector<1x8xi32>
    %c0_i32_11 = arith.constant 0 : i32
    %36 = vector.broadcast %c0_i32_11 : i32 to vector<1x8xi32>
    %37 = arith.cmpi slt, %33, %36 : vector<1x8xi32>
    %c0_i32_12 = arith.constant 0 : i32
    %38 = arith.cmpi slt, %31, %c0_i32_12 : i32
    %39 = vector.broadcast %38 : i1 to vector<1x8xi1>
    %40 = vector.broadcast %39 : vector<1x8xi1> to vector<1x8xi1>
    %41 = arith.xori %37, %40 : vector<1x8xi1>
    %42 = arith.andi %41, %35 : vector<1x8xi1>
    %43 = vector.broadcast %31 : i32 to vector<1x8xi32>
    %44 = arith.addi %33, %43 : vector<1x8xi32>
    %45 = arith.select %42, %44, %33 : vector<1x8xi1>, vector<1x8xi32>
    %46 = arith.select %27, %29, %45 : vector<1x8xi1>, vector<1x8xi32>
    %cst_13 = arith.constant 14.2857141 : f32
    %47 = vector.broadcast %cst_13 : f32 to vector<8x8xf32>
    %48 = arith.subf %20, %47 : vector<8x8xf32>
    %49 = math.exp %48 : vector<8x8xf32>
    %50 = vector.broadcast %24 : vector<1x8xi32> to vector<8x8xi32>
    %51 = arith.cmpi eq, %25, %50 : vector<8x8xi32>
    %cst_14 = arith.constant 0.000000e+00 : f32
    %52 = vector.broadcast %cst_14 : f32 to vector<8x8xf32>
    %53 = arith.select %51, %52, %49 : vector<8x8xi1>, vector<8x8xf32>
    %cst_15 = arith.constant dense<0.000000e+00> : vector<8xf32>
    %54 = vector.multi_reduction <add>, %53, %cst_15 [0] : vector<8x8xf32> to vector<8xf32>
    %55 = vector.shape_cast %54 : vector<8xf32> to vector<1x8xf32>
    %56 = vector.broadcast %46 : vector<1x8xi32> to vector<8x8xi32>
    %57 = arith.cmpi eq, %25, %56 : vector<8x8xi32>
    %cst_16 = arith.constant 0.000000e+00 : f32
    %58 = vector.broadcast %cst_16 : f32 to vector<8x8xf32>
    %59 = arith.select %57, %20, %58 : vector<8x8xi1>, vector<8x8xf32>
    %cst_17 = arith.constant dense<0.000000e+00> : vector<8xf32>
    %60 = vector.multi_reduction <add>, %59, %cst_17 [0] : vector<8x8xf32> to vector<8xf32>
    %61 = vector.shape_cast %60 : vector<8xf32> to vector<1x8xf32>
    %62 = math.log %55 : vector<1x8xf32>
    %cst_18 = arith.constant 14.2857141 : f32
    %63 = vector.broadcast %cst_18 : f32 to vector<1x8xf32>
    %64 = arith.addf %63, %62 : vector<1x8xf32>
    %65 = arith.subf %64, %61 : vector<1x8xf32>
    %c0_19 = arith.constant 0 : index
    %c0_20 = arith.constant 0 : index
    %66 = vector.load %arg3[%c0_19, %c0_20] : memref<1x8xf32, #tpu.memory_space<vmem>>, vector<1x8xf32>
    tpu.vector_store %arg3[%c0_19, %c0_20], %65 {strides = array<i32>} : memref<1x8xf32, #tpu.memory_space<vmem>>, vector<1x8xf32>,
    return
  }
  func.func @transform_0(%arg0: i32) -> (i32, i32) {
    %c0_i32 = arith.constant 0 : i32
    %c0_i32_0 = arith.constant 0 : i32
    return %arg0, %c0_i32 : i32, i32
  }
  func.func @transform_1(%arg0: i32) -> (i32, i32) {
    %c0_i32 = arith.constant 0 : i32
    %c0_i32_0 = arith.constant 0 : i32
    %c0_i32_1 = arith.constant 0 : i32
    return %c0_i32, %c0_i32_0 : i32, i32
  }
  func.func @transform_2(%arg0: i32) -> (i32, i32) {
    %c0_i32 = arith.constant 0 : i32
    %c0_i32_0 = arith.constant 0 : i32
    return %c0_i32, %arg0 : i32, i32
  }
}

</mosaic_0001>

<llo_original>
// kernel: tpu_custom_call.1
$region0: #{tpu_custom_call.1}
  #allocation0 [shape = 'u32[]', space=smem, size = 0x4, offset = 0x4, fixed_abs, tag = 'smem constant byte address 0x4 - core index']
  #allocation1 [shape = 'u32[72,128]{1,0:T(1,128)}', space=vmem, size = 0x9000, scoped, tag = 'internal scratch']
  %s0 = inlined_call_operand.hbm [shape: f32[8,32], index: 0, kind: input, shape index: {}]
  %s1 = inlined_call_operand.hbm [shape: f32[8,32], index: 1, kind: input, shape index: {}]
  %s2 = inlined_call_operand.hbm [shape: f32[1,8], index: 2, kind: output, shape index: {}]
  %s3 = sld [smem:[#allocation0]]
  $region26: #{tpu_custom_call.1} parent=0
    _
  %s5 = ssub.s32 1, %s3
  %s6 = scalar_select 0, %s5, %s3
  $region1: #{tpu_custom_call.1} parent=0
    #allocation2 [shape = 'u8[4096]{0}', space=vmem, size = 0x1000, scoped, tag = 'input window, operand 0, single buffered']
    #allocation3 [shape = 's32[1]{0}', space=sflag, size = 0x4, scoped, tag = 'scoped memory for tpu_custom_call.1']
    #allocation4 [shape = 's32[1]{0}', space=sflag, size = 0x4, scoped, tag = 'scoped memory for tpu_custom_call.1']
    #allocation5 [shape = 'u8[4096]{0}', space=vmem, size = 0x1000, scoped, tag = 'input window, operand 1, single buffered']
    #allocation6 [shape = 's32[1]{0}', space=sflag, size = 0x4, scoped, tag = 'scoped memory for tpu_custom_call.1']
    #allocation7 [shape = 'u8[512]{0}', space=vmem, size = 0x400, scoped, tag = 'output window, operand 0, single buffered']
    %7 = vsyncpa [#allocation3], 0
    %8 = vsyncpa [#allocation6], 0
    %9 = vsyncpa [#allocation4], 0
    // Predicated region
    $region2: #{tpu_custom_call.1} parent=1 // pred_check
      _
    $region3: #{tpu_custom_call.1} parent=1 // pred_check_branch
      %11 = sbr.rel (0) target = $region5
    $region4: #{tpu_custom_call.1} parent=1 // pred_region
      %13 = vsyncadd [#allocation3], 0
      %s15 = sshll.u32 %s0, 4
      %s16 = int_to_ptr.hbm [resolvable:$true] %s15
      %s17 = sshll.u32 [#allocation2], 4
      %s18 = int_to_ptr.vmem [resolvable:$true] %s17
      %20 = dma.hbm_to_vmem [thread:$0]  %s16, 128, %s18, [#allocation3]
    $region5: #{tpu_custom_call.1} parent=1 // pred_fallthru
      _
    // Predicated region
    $region6: #{tpu_custom_call.1} parent=1 // pred_check
      _
    $region7: #{tpu_custom_call.1} parent=1 // pred_check_branch
      %22 = sbr.rel (0) target = $region9
    $region8: #{tpu_custom_call.1} parent=1 // pred_region
      %24 = vsyncadd [#allocation6], 0
      %s26 = sshll.u32 %s1, 4
      %s27 = int_to_ptr.hbm [resolvable:$true] %s26
      %s28 = sshll.u32 [#allocation5], 4
      %s29 = int_to_ptr.vmem [resolvable:$true] %s28
      %31 = dma.hbm_to_vmem [thread:$0]  %s27, 128, %s29, [#allocation6]
    $region9: #{tpu_custom_call.1} parent=1 // pred_fallthru
      _
    // Predicated region
    $region10: #{tpu_custom_call.1} parent=1 // pred_check
      _
    $region11: #{tpu_custom_call.1} parent=1 // pred_check_branch
      %33 = sbr.rel (0) target = $region13
    $region12: #{tpu_custom_call.1} parent=1 // pred_region
      %35 = dma.done [#allocation3], 128
    $region13: #{tpu_custom_call.1} parent=1 // pred_fallthru
      _
    // Predicated region
    $region14: #{tpu_custom_call.1} parent=1 // pred_check
      _
    $region15: #{tpu_custom_call.1} parent=1 // pred_check_branch
      %37 = sbr.rel (0) target = $region17
    $region16: #{tpu_custom_call.1} parent=1 // pred_region
      %39 = dma.done [#allocation6], 128
    $region17: #{tpu_custom_call.1} parent=1 // pred_fallthru
      _
    %v40 = vld [vmem:[#allocation5] sm:$0xff]
    %v41 = vmul.f32 %v40, %v40
    %vm42 = vcmask 261120
    %v43 = vsel %vm42, %v41, 0.0
    %44 = vadd.xlane.f32.xlu0 %v43
    %v45 = vpop.xlane.xlu0 %44
    %v46 = vmax.f32 %v45, 1e-24
    %v47 = vrsqrt.pop %v46
    %v48 = vmul.f32 %v47, %v46
    %v49 = vmul.f32 %v48, %v47
    %v50 = vmul.f32 0.5, %v49
    %v51 = vsub.f32 1.5, %v50
    %v52 = vmul.f32 %v47, %v51
    %vm53 = vweird.f32 %v46
    %vm54 = vweird.f32 %v47
    %vm55 = vmor %vm53, %vm54
    %v56 = vsel %vm55, %v47, %v52
    %v57 = vmul.f32 %v40, %v56
    %v58 = vld [vmem:[#allocation2] sm:$0xff]
    %v59 = vmul.f32 %v58, %v58
    %v60 = vsel %vm42, %v59, 0.0
    %61 = vadd.xlane.f32.xlu0 %v60
    %v62 = vpop.xlane.xlu0 %61
    %v63 = vmax.f32 %v62, 1e-24
    %v64 = vrsqrt.pop %v63
    %v65 = vmul.f32 %v64, %v63
    %v66 = vmul.f32 %v65, %v64
    %v67 = vmul.f32 0.5, %v66
    %v68 = vsub.f32 1.5, %v67
    %v69 = vmul.f32 %v64, %v68
    %vm70 = vweird.f32 %v63
    %vm71 = vweird.f32 %v64
    %vm72 = vmor %vm70, %vm71
    %v73 = vsel %vm72, %v64, %v69
    %v74 = vmul.f32 %v73, 14.285714
    %v75 = vmul.f32 %v58, %v74
    %v77 = vsel %vm42, %v57, 0
    %v80 = vsel %vm42, %v75, 0
    %82 = vmatpush.xpose.msra.mxu0 0.0
    %83 = vmatpush.xpose.msra.mxu0 0.0
    %84 = vmatpush.xpose.msra.mxu0 0.0
    %85 = vmatpush.xpose.msra.mxu0 0.0
    %86 = vmatpush.xpose.msra.mxu0 0.0
    %87 = vmatpush.xpose.msra.mxu0 0.0
    %88 = vmatpush.xpose.msra.mxu0 0.0
    %89 = vmatpush.xpose.msra.mxu0 0.0
    %90 = vmatpush.xpose.msra.mxu0 0.0
    %91 = vmatpush.xpose.msra.mxu0 0.0
    %92 = vmatpush.xpose.msra.mxu0 0.0
    %93 = vmatpush.xpose.msra.mxu0 0.0
    %94 = vmatpush.xpose.msra.mxu0 0.0
    %95 = vmatpush.xpose.msra.mxu0 0.0
    %96 = vmatpush.xpose.msra.mxu0 0.0
    %97 = vmatpush.xpose.msra.mxu0 %v80
    %98 = vmatmul.f32.gmra.mxu0 %v77
    %v99 = vpop.f32.mrf.mxu0
    %v100 = vadd.f32 0.0, %v99
    %101 = vdwg.mxu0
    %s102 = smul.u32 0, 8
    %v103 = vlaneseq
    %v104 = vand.u32 %v103, 127
    %v105 = vstv %s102
    %v106 = vadd.s32 %v105, %v104
    %v107 = vlaneseq
    %v108 = vshrl.u32 %v107, 7
    %vm109 = vcmp.lt.s32.totalorder %v106, 4
    %v110 = vadd.s32 %v106, 4
    %vm111 = vcmp.lt.s32.totalorder %v106, 0
    %v112 = vsub.s32 0, %v106
    %v113 = vsel %vm111, %v112, %v106
    %v114 = vshrl.u32 %v113, 2
    %v115 = vand.u32 %v113, 3
    %v116 = vsub.s32 0, %v115
    %v117 = vsel %vm111, %v116, %v115
    %vm118 = vcmp.ne.s32.totalorder %v117, 0
    %vm119 = vcmp.lt.s32.totalorder %v117, 0
    %vm120 = vmand %vm119, %vm118
    %v121 = vadd.s32 %v117, 4
    %v122 = vsel %vm120, %v121, %v117
    %v123 = vsel %vm109, %v110, %v122
    %v124 = vsub.f32 %v100, 14.285714
    %v125 = vmul.f32 %v124, 1.442695
    %v126 = vpow.pop %v125
    %vm127 = vcmp.eq.s32.totalorder %v108, %v106
    %v128 = vsel %vm127, 0.0, %v126
    %vm129 = vcmask 64512
    %v130 = vsel %vm129, %v128, 0.0
    %v131 = vrot.slane %v130, 4
    %v132 = vadd.f32 %v130, %v131
    %v133 = vrot.slane %v132, 2
    %v134 = vadd.f32 %v132, %v133
    %v135 = vrot.slane %v134, 1
    %v136 = vadd.f32 %v134, %v135
    %vm137 = vcmp.eq.s32.totalorder %v108, %v123
    %v138 = vsel %vm137, %v100, 0.0
    %v139 = vsel %vm129, %v138, 0.0
    %v140 = vrot.slane %v139, 4
    %v141 = vadd.f32 %v139, %v140
    %v142 = vrot.slane %v141, 2
    %v143 = vadd.f32 %v141, %v142
    %v144 = vrot.slane %v143, 1
    %v145 = vadd.f32 %v143, %v144
    %v146 = vlog2.pop %v136
    %v147 = vmul.f32 %v146, 0.6931472
    %v148 = vadd.f32 %v147, 14.285714
    %v149 = vsub.f32 %v148, %v145
    %vm150 = vcmask 57344
    %151 = vst.msk [vmem:[#allocation7] sm:$0x1] %vm150, %v149
    // Predicated region
    $region18: #{tpu_custom_call.1} parent=1 // pred_check
      _
    $region19: #{tpu_custom_call.1} parent=1 // pred_check_branch
      %153 = sbr.rel (0) target = $region21
    $region20: #{tpu_custom_call.1} parent=1 // pred_region
      %155 = vsyncadd [#allocation4], 0
      %s157 = sshll.u32 [#allocation7], 4
      %s158 = int_to_ptr.vmem [resolvable:$true] %s157
      %s159 = sshll.u32 %s2, 4
      %s160 = int_to_ptr.hbm [resolvable:$true] %s159
      %162 = dma.vmem_to_hbm [thread:$0]  %s158, 16, %s160, [#allocation4]
    $region21: #{tpu_custom_call.1} parent=1 // pred_fallthru
      _
    // Predicated region
    $region22: #{tpu_custom_call.1} parent=1 // pred_check
      _
    $region23: #{tpu_custom_call.1} parent=1 // pred_check_branch
      %164 = sbr.rel (0) target = $region25
    $region24: #{tpu_custom_call.1} parent=1 // pred_region
      %166 = dma.done [#allocation4], 16
    $region25: #{tpu_custom_call.1} parent=1 // pred_fallthru
      _
    %167 = vsyncpa [#allocation3], 1
    %168 = vsyncpa [#allocation6], 1
    %169 = vsyncpa [#allocation4], 1

</llo_original>
